<compile_context>
chip_gen: v7x
topology: tpu7x:2x2x1
jax: 0.10.0
libtpu: 0.0.40
codegen_flags: <defaults>
</compile_context>

<pallas_src>
import jax
import jax.numpy as jnp
from jax.experimental import pallas as pl
from jax.experimental.pallas import tpu as pltpu

HID = 32              # hidden width of Q_net (Linear1 / Linear2 outputs)
LANES = 128
SUBLANES = 8
MIN_SPLIT_ROWS = 1024  # only force a >=2-step grid (v7x megacore) if tiles stay this big


def _round_up(n, m):
    return (n + m - 1) // m * m


def make_layout(state_space, action_space, hidden=HID):
    """Row offsets of each parameter inside the packed (rows, 128) slab."""
    assert hidden <= LANES and action_space <= LANES, "slab packing assumes widths <= 128"
    sp = _round_up(state_space, SUBLANES)   # 8-aligned row span of w1
    hp = LANES                              # row span of w2 / w3 (matches 128-lane h)
    off_w1 = 0
    off_b1 = off_w1 + sp
    off_w2 = off_b1 + SUBLANES
    off_b2 = off_w2 + hp
    off_w3 = off_b2 + SUBLANES
    off_b3 = off_w3 + hp
    rows = off_b3 + SUBLANES
    return dict(state_space=state_space, action_space=action_space, hidden=hidden,
                sp=sp, hp=hp, rows=rows,
                off_w1=off_w1, off_b1=off_b1, off_w2=off_w2, off_b2=off_b2,
                off_w3=off_w3, off_b3=off_b3)


def pack_params(params, layout, compute_dtype=jnp.bfloat16):
    """Pack w1,b1,w2,b2,w3,b3 into one contiguous, zero-padded (rows, 128) slab.

    bf16 (default) is MXU-native on v5e/v6e/v7x and halves the param DMA bytes;
    f32 gives exact parity with the PyTorch module.
    """
    L = layout
    hid, ss, asp = L["hidden"], L["state_space"], L["action_space"]
    slab = jnp.zeros((L["rows"], LANES), jnp.float32)
    slab = slab.at[L["off_w1"]:L["off_w1"] + ss, :hid].set(params["w1"])
    slab = slab.at[L["off_b1"], :hid].set(params["b1"].reshape(-1))
    slab = slab.at[L["off_w2"]:L["off_w2"] + hid, :hid].set(params["w2"])
    slab = slab.at[L["off_b2"], :hid].set(params["b2"].reshape(-1))
    slab = slab.at[L["off_w3"]:L["off_w3"] + hid, :asp].set(params["w3"])
    slab = slab.at[L["off_b3"], :asp].set(params["b3"].reshape(-1))
    return slab.astype(compute_dtype)


def _make_qnet_kernel(layout):
    S = layout["state_space"]
    A = layout["action_space"]
    hp = layout["hp"]
    ow1, ob1 = layout["off_w1"], layout["off_b1"]
    ow2, ob2 = layout["off_w2"], layout["off_b2"]
    ow3, ob3 = layout["off_w3"], layout["off_b3"]

    def kernel(x_ref, slab_ref, o_ref):
        cdt = slab_ref.dtype                       # compute dtype (bf16 or f32)
        x = x_ref[...].astype(cdt)                 # (tb, S) unpadded input tile

        # Layer 1: Linear(S, 32) + ReLU.  w1 sliced to the true S rows (K = S);
        # padded hidden columns (>=32) of the slab are exactly 0.
        w1 = slab_ref[pl.ds(ow1, S), :]
        b1 = slab_ref[pl.ds(ob1, 1), :].astype(jnp.float32)
        h = jnp.dot(x, w1, preferred_element_type=jnp.float32) + b1
        h = jnp.maximum(h, 0.0)                    # f32 bias+ReLU (v5e-safe)

        # Layer 2: Linear(32, 32) + ReLU (zero-padded rows/cols of w2 keep pads at 0).
        w2 = slab_ref[pl.ds(ow2, hp), :]
        b2 = slab_ref[pl.ds(ob2, 1), :].astype(jnp.float32)
        h = jnp.dot(h.astype(cdt), w2, preferred_element_type=jnp.float32) + b2
        h = jnp.maximum(h, 0.0)

        # Layer 3: Linear(32, action_space), no activation.
        w3 = slab_ref[pl.ds(ow3, hp), :]
        b3 = slab_ref[pl.ds(ob3, 1), :].astype(jnp.float32)
        out = jnp.dot(h.astype(cdt), w3, preferred_element_type=jnp.float32) + b3

        # Store only the real action columns -> narrow HBM write (no 128-lane padding).
        o_ref[...] = out[:, :A].astype(o_ref.dtype)

    return kernel


def _choose_batch_tile(B, batch_tile, min_grid=2):
    """Roughly-equal, sublane-aligned tiles; waste < one sublane group per batch."""
    bp8 = _round_up(max(B, 1), SUBLANES)
    n_tiles = pl.cdiv(bp8, batch_tile)
    if n_tiles < min_grid and bp8 >= min_grid * MIN_SPLIT_ROWS:
        n_tiles = min_grid                 # give both v7x TensorCores a grid step
    return _round_up(pl.cdiv(bp8, n_tiles), SUBLANES)


def qnet_forward(x, slab, layout, *, batch_tile=4096):
    """x: (B, state_space). slab: packed params (bf16 or f32). Returns (B, action_space) f32."""
    L = layout
    B, S = x.shape
    assert S == L["state_space"]
    cdt = slab.dtype
    A = L["action_space"]
    hid = L["hidden"]

    tb = _choose_batch_tile(B, batch_tile)
    bp = _round_up(B, tb)

    if bp != B:
        # Only pass over x in the wrapper when batch padding is unavoidable;
        # fuse it with the cast to the compute dtype (single extra HBM pass).
        x_in = jnp.zeros((bp, S), cdt).at[:B, :].set(x.astype(cdt))
    else:
        x_in = x                            # kernel casts in-place; no wrapper pass

    kernel = _make_qnet_kernel(L)

    # Cost estimate from true (unpadded) dims so XLA doesn't overvalue this kernel.
    flops = 2 * B * (S * hid + hid * hid + hid * A)
    n_params = S * hid + hid + hid * hid + hid + hid * A + A
    bytes_accessed = int(B * S * x_in.dtype.itemsize
                         + n_params * slab.dtype.itemsize
                         + B * A * 4)

    out = pl.pallas_call(
        kernel,
        out_shape=jax.ShapeDtypeStruct((bp, A), jnp.float32),
        grid_spec=pl.GridSpec(
            grid=(bp // tb,),
            in_specs=[
                pl.BlockSpec((tb, S), lambda i: (i, 0)),             # stream x tiles
                pl.BlockSpec((L["rows"], LANES), lambda i: (0, 0)),  # params resident
            ],
            out_specs=pl.BlockSpec((tb, A), lambda i: (i, 0)),       # narrow output
        ),
        compiler_params=pltpu.CompilerParams(
            dimension_semantics=("parallel",),   # shard batch tiles across v7x TCs
        ),
        cost_estimate=pl.CostEstimate(flops=flops, transcendentals=0,
                                      bytes_accessed=bytes_accessed),
    )(x_in, slab)

    return out[:B, :] if bp != B else out


def init_params(key, state_space, action_space, hidden=HID):
    """Deterministic init mimicking nn.Linear default (uniform +/- 1/sqrt(fan_in))."""
    ks = jax.random.split(key, 6)

    def linear(kw, kb, fan_in, fan_out):
        bound = 1.0 / jnp.sqrt(jnp.float32(fan_in))
        w = jax.random.uniform(kw, (fan_in, fan_out), jnp.float32, -bound, bound)
        b = jax.random.uniform(kb, (fan_out,), jnp.float32, -bound, bound)
        return w, b

    w1, b1 = linear(ks[0], ks[1], state_space, hidden)
    w2, b2 = linear(ks[2], ks[3], hidden, hidden)
    w3, b3 = linear(ks[4], ks[5], hidden, action_space)
    return {"w1": w1, "b1": b1, "w2": w2, "b2": b2, "w3": w3, "b3": b3}


def qnet_reference(x, p):
    h1 = jnp.maximum(x @ p["w1"] + p["b1"], 0.0)
    h2 = jnp.maximum(h1 @ p["w2"] + p["b2"], 0.0)
    return h2 @ p["w3"] + p["b3"]


if __name__ == "__main__":
    key = jax.random.PRNGKey(0)
    k_param, k_x, k_xl = jax.random.split(key, 3)

    state_space = 4
    action_space = 4
    batch = 2

    params = init_params(k_param, state_space, action_space)
    layout = make_layout(state_space, action_space)
    x = jax.random.normal(k_x, (batch, state_space), jnp.float32)
    ref = qnet_reference(x, params)

    # Default bf16 compute path (MXU-native, half DMA bytes), f32 accumulation.
    slab_bf16 = pack_params(params, layout)  # bf16 by default
    out_bf16 = jax.block_until_ready(qnet_forward(x, slab_bf16, layout))
    assert out_bf16.shape == (batch, action_space)
    assert jnp.allclose(out_bf16, ref, atol=5e-2), "bf16 path mismatch"

    # f32 compute path: exact semantics of the PyTorch module.
    slab_f32 = pack_params(params, layout, jnp.float32)
    out_f32 = jax.block_until_ready(qnet_forward(x, slab_f32, layout))
    assert out_f32.shape == (batch, action_space)
    assert jnp.allclose(out_f32, ref, atol=1e-4, rtol=1e-3), "f32 path mismatch"

    # Medium batch: exercises the multi-step grid (4 tiles) and the no-padding,
    # cast-in-kernel input path.
    xl = jax.random.normal(k_xl, (1024, state_space), jnp.float32)
    refl = qnet_reference(xl, params)
    outl = jax.block_until_ready(qnet_forward(xl, slab_bf16, layout, batch_tile=256))
    assert outl.shape == (1024, action_space)
    assert jnp.allclose(outl, refl, atol=1e-1), "multi-tile bf16 path mismatch"

    # TODO(synk): sample_action's epsilon-greedy host RNG / .argmax().item() is host-side
    # control flow, not part of the forward pass, and is not translated to a kernel.
    print("KERNEL_OK")
</pallas_src>

<mosaic_0001>
module attributes {stable_mosaic.version = 11 : i64} {
  func.func @kernel(%arg0: i32, %arg1: memref<8x4xbf16, #tpu.memory_space<vmem>>, %arg2: memref<288x128xbf16, #tpu.memory_space<vmem>>, %arg3: memref<8x4xf32, #tpu.memory_space<vmem>>) attributes {dimension_semantics = [#tpu.dimension_semantics<parallel>], iteration_bounds = array<i64: 1>, scalar_prefetch = 0 : i64, scratch_operands = 0 : i64, tpu.core_type = #tpu.core_type<tc>, window_params = [{transform_indices = @transform_0, window_bounds = array<i64: 8, 4>}, {pipeline_mode = #tpu.pipeline_mode<synchronous>, transform_indices = @transform_1, window_bounds = array<i64: 288, 128>}, {transform_indices = @transform_2, window_bounds = array<i64: 8, 4>}]} {
    %c0 = arith.constant 0 : index
    %c0_0 = arith.constant 0 : index
    %0 = vector.load %arg1[%c0, %c0_0] : memref<8x4xbf16, #tpu.memory_space<vmem>>, vector<8x4xbf16>
    %c0_1 = arith.constant 0 : index
    %c0_2 = arith.constant 0 : index
    %1 = vector.load %arg2[%c0_1, %c0_2] : memref<288x128xbf16, #tpu.memory_space<vmem>>, vector<4x128xbf16>
    %c8 = arith.constant 8 : index
    %c0_3 = arith.constant 0 : index
    %2 = vector.load %arg2[%c8, %c0_3] : memref<288x128xbf16, #tpu.memory_space<vmem>>, vector<1x128xbf16>
    %3 = arith.extf %2 : vector<1x128xbf16> to vector<1x128xf32>
    %cst = arith.constant dense<0.000000e+00> : vector<8x128xf32>
    %4 = tpu.matmul %0, %1, %cst {dimension_numbers = #tpu.dot_dimension_numbers<[1], [0], [0], [1], [0, 0, 1, 1], [], []>} : vector<8x4xbf16>, vector<4x128xbf16>, vector<8x128xf32> -> vector<8x128xf32>
    %5 = vector.broadcast %3 : vector<1x128xf32> to vector<8x128xf32>
    %6 = arith.addf %4, %5 : vector<8x128xf32>
    %cst_4 = arith.constant 0.000000e+00 : f32
    %7 = vector.broadcast %cst_4 : f32 to vector<8x128xf32>
    %8 = arith.maximumf %6, %7 : vector<8x128xf32>
    %c16 = arith.constant 16 : index
    %c0_5 = arith.constant 0 : index
    %9 = vector.load %arg2[%c16, %c0_5] : memref<288x128xbf16, #tpu.memory_space<vmem>>, vector<128x128xbf16>
    %c144 = arith.constant 144 : index
    %c0_6 = arith.constant 0 : index
    %10 = vector.load %arg2[%c144, %c0_6] : memref<288x128xbf16, #tpu.memory_space<vmem>>, vector<1x128xbf16>
    %11 = arith.extf %10 : vector<1x128xbf16> to vector<1x128xf32>
    %12 = arith.truncf %8 : vector<8x128xf32> to vector<8x128xbf16>
    %cst_7 = arith.constant dense<0.000000e+00> : vector<8x128xf32>
    %13 = tpu.matmul %12, %9, %cst_7 {dimension_numbers = #tpu.dot_dimension_numbers<[1], [0], [0], [1], [0, 0, 1, 1], [], []>} : vector<8x128xbf16>, vector<128x128xbf16>, vector<8x128xf32> -> vector<8x128xf32>
    %14 = vector.broadcast %11 : vector<1x128xf32> to vector<8x128xf32>
    %15 = arith.addf %13, %14 : vector<8x128xf32>
    %cst_8 = arith.constant 0.000000e+00 : f32
    %16 = vector.broadcast %cst_8 : f32 to vector<8x128xf32>
    %17 = arith.maximumf %15, %16 : vector<8x128xf32>
    %c152 = arith.constant 152 : index
    %c0_9 = arith.constant 0 : index
    %18 = vector.load %arg2[%c152, %c0_9] : memref<288x128xbf16, #tpu.memory_space<vmem>>, vector<128x128xbf16>
    %c280 = arith.constant 280 : index
    %c0_10 = arith.constant 0 : index
    %19 = vector.load %arg2[%c280, %c0_10] : memref<288x128xbf16, #tpu.memory_space<vmem>>, vector<1x128xbf16>
    %20 = arith.extf %19 : vector<1x128xbf16> to vector<1x128xf32>
    %21 = arith.truncf %17 : vector<8x128xf32> to vector<8x128xbf16>
    %cst_11 = arith.constant dense<0.000000e+00> : vector<8x128xf32>
    %22 = tpu.matmul %21, %18, %cst_11 {dimension_numbers = #tpu.dot_dimension_numbers<[1], [0], [0], [1], [0, 0, 1, 1], [], []>} : vector<8x128xbf16>, vector<128x128xbf16>, vector<8x128xf32> -> vector<8x128xf32>
    %23 = vector.broadcast %20 : vector<1x128xf32> to vector<8x128xf32>
    %24 = arith.addf %22, %23 : vector<8x128xf32>
    %25 = vector.extract_strided_slice %24 {offsets = [0, 0], sizes = [8, 4], strides = [1, 1]} : vector<8x128xf32> to vector<8x4xf32>
    %c0_12 = arith.constant 0 : index
    %c0_13 = arith.constant 0 : index
    %26 = vector.load %arg3[%c0_12, %c0_13] : memref<8x4xf32, #tpu.memory_space<vmem>>, vector<8x4xf32>
    tpu.vector_store %arg3[%c0_12, %c0_13], %25 {strides = array<i32>} : memref<8x4xf32, #tpu.memory_space<vmem>>, vector<8x4xf32>,
    return
  }
  func.func @transform_0(%arg0: i32) -> (i32, i32) {
    %c0_i32 = arith.constant 0 : i32
    %c0_i32_0 = arith.constant 0 : i32
    return %arg0, %c0_i32 : i32, i32
  }
  func.func @transform_1(%arg0: i32) -> (i32, i32) {
    %c0_i32 = arith.constant 0 : i32
    %c0_i32_0 = arith.constant 0 : i32
    %c0_i32_1 = arith.constant 0 : i32
    return %c0_i32, %c0_i32_0 : i32, i32
  }
  func.func @transform_2(%arg0: i32) -> (i32, i32) {
    %c0_i32 = arith.constant 0 : i32
    %c0_i32_0 = arith.constant 0 : i32
    return %arg0, %c0_i32 : i32, i32
  }
}

</mosaic_0001>

<llo_original>
// kernel: tpu_custom_call.1
$region0: #{tpu_custom_call.1}
  #allocation0 [shape = 'u32[]', space=smem, size = 0x4, offset = 0x4, fixed_abs, tag = 'smem constant byte address 0x4 - core index']
  #allocation1 [shape = 'u32[144,128]{1,0:T(1,128)}', space=vmem, size = 0x12000, scoped, tag = 'internal scratch']
  %s0 = inlined_call_operand.vmem [shape: bf16[8,4], index: 0, kind: input, shape index: {}]
  %s1 = inlined_call_operand.hbm [shape: bf16[288,128], index: 1, kind: input, shape index: {}]
  %s2 = inlined_call_operand.vmem [shape: f32[8,4], index: 2, kind: output, shape index: {}]
  %s3 = sld [smem:[#allocation0]]
  $region22: #{tpu_custom_call.1} parent=0
    _
  %s5 = ssub.s32 1, %s3
  %s6 = scalar_select 0, %s5, %s3
  $region1: #{tpu_custom_call.1} parent=0
    #allocation2 [shape = 'u8[73728]{0}', space=vmem, size = 0x12000, scoped, tag = 'input window, operand 1, single buffered']
    #allocation3 [shape = 's32[1]{0}', space=sflag, size = 0x4, scoped, tag = 'scoped memory for tpu_custom_call.1']
    %7 = vsyncpa [#allocation3], 0
    // Predicated region
    $region2: #{tpu_custom_call.1} parent=1 // pred_check
      _
    $region3: #{tpu_custom_call.1} parent=1 // pred_check_branch
      %9 = sbr.rel (0) target = $region5
    $region4: #{tpu_custom_call.1} parent=1 // pred_region
      _
    $region5: #{tpu_custom_call.1} parent=1 // pred_fallthru
      _
    // Predicated region
    $region6: #{tpu_custom_call.1} parent=1 // pred_check
      _
    $region7: #{tpu_custom_call.1} parent=1 // pred_check_branch
      %11 = sbr.rel (0) target = $region9
    $region8: #{tpu_custom_call.1} parent=1 // pred_region
      %s13 = ssub.s32 2304, 2304
      %14 = vsyncadd [#allocation3], %s13
      %s15 = sshll.u32 [#allocation2], 4
      %s16 = int_to_ptr.vmem [resolvable:$true] %s15
      %21 = dma.hbm_to_vmem [thread:$0]  %s1, 2304, %s16, [#allocation3], 64, 64, 4
    $region9: #{tpu_custom_call.1} parent=1 // pred_fallthru
      _
    // Predicated region
    $region10: #{tpu_custom_call.1} parent=1 // pred_check
      _
    $region11: #{tpu_custom_call.1} parent=1 // pred_check_branch
      %23 = sbr.rel (0) target = $region13
    $region12: #{tpu_custom_call.1} parent=1 // pred_region
      %24 = dma.done [#allocation3], 2304
    $region13: #{tpu_custom_call.1} parent=1 // pred_fallthru
      _
    %v26 = vld [vmem:[%s0] sm:$0xf]
    %v27 = vld [vmem:[#allocation2] sm:$0x3]
    %v28 = vld [vmem:[#allocation2 + $0x4] sm:$0x1]
    %v29 = vunpack.c.l.bf16 %v28
    %v30 = vlaneseq
    %v31 = vshrl.u32 %v30, 7
    %v32 = vsub.s32 0, %v31
    %v33 = vrot.slane %v29, %v32
    %vm34 = vcmask 31744
    %v36 = vsel %vm34, %v26, 0
    %vm38 = vcmask 1041408
    %v40 = vsel %vm38, %v27, 0
    %42 = vmatprep.subr.bf16.mxu0 0
    %43 = vmatpush1.bf16.msra.mxu0 %v40
    %44 = vmatprep.subr.bf16.mxu0 0
    %45 = vmatpush1.bf16.msra.mxu0 0
    %46 = vmatprep.subr.bf16.mxu0 0
    %47 = vmatpush1.bf16.msra.mxu0 0
    %48 = vmatprep.subr.bf16.mxu0 0
    %49 = vmatpush1.bf16.msra.mxu0 0
    %50 = vmatprep.subr.bf16.mxu0 0
    %51 = vmatpush1.bf16.msra.mxu0 0
    %52 = vmatprep.subr.bf16.mxu0 0
    %53 = vmatpush1.bf16.msra.mxu0 0
    %54 = vmatprep.subr.bf16.mxu0 0
    %55 = vmatpush1.bf16.msra.mxu0 0
    %56 = vmatprep.subr.bf16.mxu0 0
    %57 = vmatpush1.bf16.msra.mxu0 0
    %58 = vmatprep.subr.bf16.mxu0 0
    %59 = vmatpush1.bf16.msra.mxu0 0
    %60 = vmatprep.subr.bf16.mxu0 0
    %61 = vmatpush1.bf16.msra.mxu0 0
    %62 = vmatprep.subr.bf16.mxu0 0
    %63 = vmatpush1.bf16.msra.mxu0 0
    %64 = vmatprep.subr.bf16.mxu0 0
    %65 = vmatpush1.bf16.msra.mxu0 0
    %66 = vmatprep.subr.bf16.mxu0 0
    %67 = vmatpush1.bf16.msra.mxu0 0
    %68 = vmatprep.subr.bf16.mxu0 0
    %69 = vmatpush1.bf16.msra.mxu0 0
    %70 = vmatprep.subr.bf16.mxu0 0
    %71 = vmatpush1.bf16.msra.mxu0 0
    %72 = vmatprep.subr.bf16.mxu0 0
    %73 = vmatpush1.bf16.msra.mxu0 0
    %74 = vmatprep.mubr.bf16.mxu0 0
    %75 = vmatmul.mubr.bf16.gmra.mrb[0].mxu0 %v36
    %v76 = vpop.f32.mrb[0].mxu0
    %v77 = vadd.f32 %v33, %v76
    %v78 = vpop.f32.mrb[0].mxu0
    %v79 = vpop.f32.mrb[0].mxu0
    %v80 = vpop.f32.mrb[0].mxu0
    %81 = vdwg.mxu0
    %v82 = vmax.f32 %v77, 0.0
    %v83 = vld [vmem:[#allocation2 + $0x8] sm:$0xf]
    %v84 = vld [vmem:[#allocation2 + $0xc] sm:$0xf]
    %v85 = vld [vmem:[#allocation2 + $0x10] sm:$0xf]
    %v86 = vld [vmem:[#allocation2 + $0x14] sm:$0xf]
    %v87 = vld [vmem:[#allocation2 + $0x18] sm:$0xf]
    %v88 = vld [vmem:[#allocation2 + $0x1c] sm:$0xf]
    %v89 = vld [vmem:[#allocation2 + $0x20] sm:$0xf]
    %v90 = vld [vmem:[#allocation2 + $0x24] sm:$0xf]
    %v91 = vld [vmem:[#allocation2 + $0x28] sm:$0xf]
    %v92 = vld [vmem:[#allocation2 + $0x2c] sm:$0xf]
    %v93 = vld [vmem:[#allocation2 + $0x30] sm:$0xf]
    %v94 = vld [vmem:[#allocation2 + $0x34] sm:$0xf]
    %v95 = vld [vmem:[#allocation2 + $0x38] sm:$0xf]
    %v96 = vld [vmem:[#allocation2 + $0x3c] sm:$0xf]
    %v97 = vld [vmem:[#allocation2 + $0x40] sm:$0xf]
    %v98 = vld [vmem:[#allocation2 + $0x44] sm:$0xf]
    %v99 = vld [vmem:[#allocation2 + $0x48] sm:$0x1]
    %v100 = vunpack.c.l.bf16 %v99
    %v101 = vpack.c.bf16 %v82, %v82
    %v102 = vlaneseq
    %v103 = vshrl.u32 %v102, 7
    %v104 = vsub.s32 0, %v103
    %v105 = vrot.slane %v100, %v104
    %v122 = vunpack.c.l.b16 %v83
    %v123 = vunpack.c.l.b16 %v84
    %v124 = vunpack.c.l.b16 %v85
    %v125 = vunpack.c.l.b16 %v86
    %v126 = vunpack.c.l.b16 %v87
    %v127 = vunpack.c.l.b16 %v88
    %v128 = vunpack.c.l.b16 %v89
    %v129 = vunpack.c.l.b16 %v90
    %v130 = vunpack.c.l.b16 %v91
    %v131 = vunpack.c.l.b16 %v92
    %v132 = vunpack.c.l.b16 %v93
    %v133 = vunpack.c.l.b16 %v94
    %v134 = vunpack.c.l.b16 %v95
    %v135 = vunpack.c.l.b16 %v96
    %v136 = vunpack.c.l.b16 %v97
    %v137 = vunpack.c.l.b16 %v98
    %v138 = vpack.c.b16 %v123, %v122
    %v139 = vpack.c.b16 %v125, %v124
    %v140 = vpack.c.b16 %v127, %v126
    %v141 = vpack.c.b16 %v129, %v128
    %v142 = vpack.c.b16 %v131, %v130
    %v143 = vpack.c.b16 %v133, %v132
    %v144 = vpack.c.b16 %v135, %v134
    %v145 = vpack.c.b16 %v137, %v136
    %154 = vmatprep.subr.bf16.mxu0 0
    %155 = vmatpush1.bf16.msra.mxu0 %v138
    %156 = vmatprep.subr.bf16.mxu0 0
    %157 = vmatpush1.bf16.msra.mxu0 %v139
    %158 = vmatprep.subr.bf16.mxu0 0
    %159 = vmatpush1.bf16.msra.mxu0 %v140
    %160 = vmatprep.subr.bf16.mxu0 0
    %161 = vmatpush1.bf16.msra.mxu0 %v141
    %162 = vmatprep.subr.bf16.mxu0 0
    %163 = vmatpush1.bf16.msra.mxu0 %v142
    %164 = vmatprep.subr.bf16.mxu0 0
    %165 = vmatpush1.bf16.msra.mxu0 %v143
    %166 = vmatprep.subr.bf16.mxu0 0
    %167 = vmatpush1.bf16.msra.mxu0 %v144
    %168 = vmatprep.subr.bf16.mxu0 0
    %169 = vmatpush1.bf16.msra.mxu0 %v145
    %170 = vmatprep.subr.bf16.mxu0 0
    %171 = vmatpush1.bf16.msra.mxu0 0
    %172 = vmatprep.subr.bf16.mxu0 0
    %173 = vmatpush1.bf16.msra.mxu0 0
    %174 = vmatprep.subr.bf16.mxu0 0
    %175 = vmatpush1.bf16.msra.mxu0 0
    %176 = vmatprep.subr.bf16.mxu0 0
    %177 = vmatpush1.bf16.msra.mxu0 0
    %178 = vmatprep.subr.bf16.mxu0 0
    %179 = vmatpush1.bf16.msra.mxu0 0
    %180 = vmatprep.subr.bf16.mxu0 0
    %181 = vmatpush1.bf16.msra.mxu0 0
    %182 = vmatprep.subr.bf16.mxu0 0
    %183 = vmatpush1.bf16.msra.mxu0 0
    %184 = vmatprep.subr.bf16.mxu0 0
    %185 = vmatpush1.bf16.msra.mxu0 0
    %186 = vmatprep.mubr.bf16.mxu0 0
    %187 = vmatmul.mubr.bf16.gmra.mrb[0].mxu0 %v101
    %v188 = vpop.f32.mrb[0].mxu0
    %v189 = vadd.f32 %v105, %v188
    %v190 = vpop.f32.mrb[0].mxu0
    %v191 = vpop.f32.mrb[0].mxu0
    %v192 = vpop.f32.mrb[0].mxu0
    %193 = vdwg.mxu0
    %v194 = vmax.f32 %v189, 0.0
    %v195 = vld [vmem:[#allocation2 + $0x4c] sm:$0xf]
    %v196 = vld [vmem:[#allocation2 + $0x50] sm:$0xf]
    %v197 = vld [vmem:[#allocation2 + $0x54] sm:$0xf]
    %v198 = vld [vmem:[#allocation2 + $0x58] sm:$0xf]
    %v199 = vld [vmem:[#allocation2 + $0x5c] sm:$0xf]
    %v200 = vld [vmem:[#allocation2 + $0x60] sm:$0xf]
    %v201 = vld [vmem:[#allocation2 + $0x64] sm:$0xf]
    %v202 = vld [vmem:[#allocation2 + $0x68] sm:$0xf]
    %v203 = vld [vmem:[#allocation2 + $0x6c] sm:$0xf]
    %v204 = vld [vmem:[#allocation2 + $0x70] sm:$0xf]
    %v205 = vld [vmem:[#allocation2 + $0x74] sm:$0xf]
    %v206 = vld [vmem:[#allocation2 + $0x78] sm:$0xf]
    %v207 = vld [vmem:[#allocation2 + $0x7c] sm:$0xf]
    %v208 = vld [vmem:[#allocation2 + $0x80] sm:$0xf]
    %v209 = vld [vmem:[#allocation2 + $0x84] sm:$0xf]
    %v210 = vld [vmem:[#allocation2 + $0x88] sm:$0xf]
    %v211 = vld [vmem:[#allocation2 + $0x8c] sm:$0x1]
    %v212 = vunpack.c.l.bf16 %v211
    %v213 = vpack.c.bf16 %v194, %v194
    %v214 = vlaneseq
    %v215 = vshrl.u32 %v214, 7
    %v216 = vsub.s32 0, %v215
    %v217 = vrot.slane %v212, %v216
    %v234 = vunpack.c.l.b16 %v195
    %v235 = vunpack.c.l.b16 %v196
    %v236 = vunpack.c.l.b16 %v197
    %v237 = vunpack.c.l.b16 %v198
    %v238 = vunpack.c.l.b16 %v199
    %v239 = vunpack.c.l.b16 %v200
    %v240 = vunpack.c.l.b16 %v201
    %v241 = vunpack.c.l.b16 %v202
    %v242 = vunpack.c.l.b16 %v203
    %v243 = vunpack.c.l.b16 %v204
    %v244 = vunpack.c.l.b16 %v205
    %v245 = vunpack.c.l.b16 %v206
    %v246 = vunpack.c.l.b16 %v207
    %v247 = vunpack.c.l.b16 %v208
    %v248 = vunpack.c.l.b16 %v209
    %v249 = vunpack.c.l.b16 %v210
    %v250 = vpack.c.b16 %v235, %v234
    %v251 = vpack.c.b16 %v237, %v236
    %v252 = vpack.c.b16 %v239, %v238
    %v253 = vpack.c.b16 %v241, %v240
    %v254 = vpack.c.b16 %v243, %v242
    %v255 = vpack.c.b16 %v245, %v244
    %v256 = vpack.c.b16 %v247, %v246
    %v257 = vpack.c.b16 %v249, %v248
    %266 = vmatprep.subr.bf16.mxu0 0
    %267 = vmatpush1.bf16.msra.mxu0 %v250
    %268 = vmatprep.subr.bf16.mxu0 0
    %269 = vmatpush1.bf16.msra.mxu0 %v251
    %270 = vmatprep.subr.bf16.mxu0 0
    %271 = vmatpush1.bf16.msra.mxu0 %v252
    %272 = vmatprep.subr.bf16.mxu0 0
    %273 = vmatpush1.bf16.msra.mxu0 %v253
    %274 = vmatprep.subr.bf16.mxu0 0
    %275 = vmatpush1.bf16.msra.mxu0 %v254
    %276 = vmatprep.subr.bf16.mxu0 0
    %277 = vmatpush1.bf16.msra.mxu0 %v255
    %278 = vmatprep.subr.bf16.mxu0 0
    %279 = vmatpush1.bf16.msra.mxu0 %v256
    %280 = vmatprep.subr.bf16.mxu0 0
    %281 = vmatpush1.bf16.msra.mxu0 %v257
    %282 = vmatprep.subr.bf16.mxu0 0
    %283 = vmatpush1.bf16.msra.mxu0 0
    %284 = vmatprep.subr.bf16.mxu0 0
    %285 = vmatpush1.bf16.msra.mxu0 0
    %286 = vmatprep.subr.bf16.mxu0 0
    %287 = vmatpush1.bf16.msra.mxu0 0
    %288 = vmatprep.subr.bf16.mxu0 0
    %289 = vmatpush1.bf16.msra.mxu0 0
    %290 = vmatprep.subr.bf16.mxu0 0
    %291 = vmatpush1.bf16.msra.mxu0 0
    %292 = vmatprep.subr.bf16.mxu0 0
    %293 = vmatpush1.bf16.msra.mxu0 0
    %294 = vmatprep.subr.bf16.mxu0 0
    %295 = vmatpush1.bf16.msra.mxu0 0
    %296 = vmatprep.subr.bf16.mxu0 0
    %297 = vmatpush1.bf16.msra.mxu0 0
    %298 = vmatprep.mubr.bf16.mxu0 0
    %299 = vmatmul.mubr.bf16.gmra.mrb[0].mxu0 %v213
    %v300 = vpop.f32.mrb[0].mxu0
    %v301 = vadd.f32 %v217, %v300
    %v302 = vpop.f32.mrb[0].mxu0
    %v303 = vpop.f32.mrb[0].mxu0
    %v304 = vpop.f32.mrb[0].mxu0
    %305 = vdwg.mxu0
    %306 = vst.msk [vmem:[%s2] sm:$0xff] %vm34, %v301
    // Predicated region
    $region14: #{tpu_custom_call.1} parent=1 // pred_check
      _
    $region15: #{tpu_custom_call.1} parent=1 // pred_check_branch
      %308 = sbr.rel (0) target = $region17
    $region16: #{tpu_custom_call.1} parent=1 // pred_region
      _
    $region17: #{tpu_custom_call.1} parent=1 // pred_fallthru
      _
    // Predicated region
    $region18: #{tpu_custom_call.1} parent=1 // pred_check
      _
    $region19: #{tpu_custom_call.1} parent=1 // pred_check_branch
      %310 = sbr.rel (0) target = $region21
    $region20: #{tpu_custom_call.1} parent=1 // pred_region
      _
    $region21: #{tpu_custom_call.1} parent=1 // pred_fallthru
      _
    %311 = vsyncpa [#allocation3], 1

</llo_original>
